<compile_context>
chip_gen: v6e
topology: v6e:2x2x1
jax: 0.10.0
libtpu: 0.0.40
codegen_flags: <defaults>
</compile_context>

<pallas_src>
import functools

import jax
import jax.numpy as jnp
from jax import lax
from jax.experimental import pallas as pl
from jax.experimental.pallas import tpu as pltpu


def _elu(x, alpha):
    # Matches torch.nn.ELU(alpha): x if x > 0 else alpha * (exp(x) - 1).
    # No clamp needed: inf in the unselected branch never becomes NaN.
    return jnp.where(x > 0, x, alpha * (jnp.exp(x) - 1.0))


def _round_up(n, m):
    return ((n + m - 1) // m) * m


def _cdiv(a, b):
    return (a + b - 1) // b


def disc_kernel(x_ref,
                w1T_ref, b1_ref,
                w2T_ref, b2_ref,
                w3T_ref, b3_ref,
                w4_ref, b4_ref,
                o_ref,
                *, alpha, sub_m, n_sub):
    """One batch tile.

    x_ref : [bm, data_dim]    natural (batch-major) layout straight from HBM
    wKT   : [out_k, in_k]     (torch weight layout, i.e. W^T for x @ W)
    bK    : [out_k, 1]
    w4    : [half, 1], b4: [1, 1]
    o_ref : [1, bm]           lane-dense row of sigmoid outputs
    """
    # Tiny resident weights; load once per grid step.
    w1T = w1T_ref[...]
    b1 = b1_ref[...]
    w2T = w2T_ref[...]
    b2 = b2_ref[...]
    w3T = w3T_ref[...]
    b3 = b3_ref[...]
    w4 = w4_ref[...]
    b4 = b4_ref[...]

    def body(j, carry):
        start = pl.multiple_of(j * sub_m, sub_m)
        # [sub_m, data_dim]; cast after the (possibly bf16) DMA, before the MXU.
        xs = x_ref[pl.ds(start, sub_m), :].astype(jnp.float32)

        # Layer 1: contract on data_dim for both operands -> [hidden, sub_m].
        # The transpose of x is folded into the matmul (no explicit XLU transpose,
        # no wrapper-side transposed copy of x).
        h = lax.dot_general(w1T, xs, (((1,), (1,)), ((), ())),
                            preferred_element_type=jnp.float32) + b1
        h = _elu(h, alpha)                                              # [hidden, sub_m]

        h = jnp.dot(w2T, h, preferred_element_type=jnp.float32) + b2
        h = _elu(h, alpha)                                              # [hidden, sub_m]

        h = jnp.dot(w3T, h, preferred_element_type=jnp.float32) + b3
        h = _elu(h, alpha)                                              # [half, sub_m]

        # Final (half -> 1) layer: VPU multiply + sublane (XLU) reduce -> lane-dense.
        logits = jnp.sum(h * w4, axis=0, keepdims=True) + b4            # [1, sub_m]
        o_ref[:, pl.ds(start, sub_m)] = jax.nn.sigmoid(logits).astype(o_ref.dtype)
        return carry

    lax.fori_loop(0, n_sub, body, 0, unroll=True)


def discriminator_25g(x, params, *, block_m=1024, sub_m=512, stream_dtype=None):
    """x: [B, data_dim]. params: dict of w1..w4 ([in,out]) and b1..b4 ([1,out])."""
    B, data_dim = x.shape
    hidden = params["w1"].shape[1]
    half = params["w3"].shape[1]

    # Optional half-width streaming of the dominant HBM stream (x).
    x_in = x if stream_dtype is None else x.astype(stream_dtype)
    x_item = jnp.dtype(x_in.dtype).itemsize

    # Batch tile on the lane axis: multiple of 128, no bigger than the batch needs.
    B_ceil = _round_up(B, 128)
    bm = min(_round_up(max(block_m, 128), 128), B_ceil)
    # v7x megacore: keep >= 2 grid steps when the batch allows it so the "parallel"
    # axis can be split across both TensorCores (no-op on single-TC v5e/v6e).
    if B_ceil >= 256 and _cdiv(B_ceil, bm) < 2:
        bm = _round_up(_cdiv(B_ceil, 2), 128)

    # VMEM budget: double-buffered x tile + double-buffered output row + resident
    # weights (BlockSpec still allocates two buffers for constant-index specs).
    wb = sum(int(v.size) * jnp.dtype(v.dtype).itemsize for v in params.values())

    def vmem_est(m):
        return 2 * m * data_dim * x_item + 2 * m * 4 + 2 * wb

    while bm > 128 and vmem_est(bm) > (40 << 20):   # stay well under v7x's 64 MiB
        bm -= 128

    grid = (_cdiv(B, bm),)
    B_work = grid[0] * bm

    # In-kernel lane sub-tile: bound the live vreg set at large bm (avoid spills).
    sm = min(_round_up(max(sub_m, 128), 128), bm)
    if bm % sm:
        sm = bm
    n_sub = bm // sm

    # One-time tiny weight layout prep (negligible next to the x stream).
    w1T = params["w1"].T                       # [hidden, data_dim]
    w2T = params["w2"].T                       # [hidden, hidden]
    w3T = params["w3"].T                       # [half, hidden]
    b1c = params["b1"].reshape(hidden, 1)
    b2c = params["b2"].reshape(hidden, 1)
    b3c = params["b3"].reshape(half, 1)
    w4c = params["w4"].reshape(half, 1)
    b4s = params["b4"].reshape(1, 1)

    def resident(a):
        # Whole (small) weight/bias resident with a constant block index (no re-fetch).
        return pl.BlockSpec(a.shape, lambda i: (0,) * a.ndim)

    flops = 2 * B_work * (data_dim * hidden + hidden * hidden + hidden * half + half)
    transcendentals = B_work * (2 * hidden + half + 1)      # exp per ELU + sigmoid
    bytes_accessed = B * data_dim * x_item + B_work * 4 + wb

    # Only raise the scoped-VMEM limit when the working set would outgrow the
    # smallest default (v5e: 16 MiB); never lower it.
    est = vmem_est(bm)
    vmem_limit = None
    if est > (12 << 20):
        vmem_limit = int(min(2 * est + (8 << 20), 48 << 20))

    kernel = functools.partial(disc_kernel, alpha=0.05, sub_m=sm, n_sub=n_sub)

    out_row = pl.pallas_call(
        kernel,
        out_shape=jax.ShapeDtypeStruct((1, B_work), jnp.float32),
        grid_spec=pltpu.PrefetchScalarGridSpec(
            num_scalar_prefetch=0,
            grid=grid,
            in_specs=[
                # x streamed in its natural layout; ragged last block reads stale
                # lanes which only ever land in discarded (padded) outputs.
                pl.BlockSpec((bm, data_dim), lambda i: (i, 0)),
                resident(w1T), resident(b1c),
                resident(w2T), resident(b2c),
                resident(w3T), resident(b3c),
                resident(w4c), resident(b4s),
            ],
            out_specs=pl.BlockSpec((1, bm), lambda i: (0, i)),
        ),
        compiler_params=pltpu.CompilerParams(
            dimension_semantics=("parallel",),
            vmem_limit_bytes=vmem_limit),
        cost_estimate=pl.CostEstimate(
            flops=int(flops),
            transcendentals=int(transcendentals),
            bytes_accessed=int(bytes_accessed)),
    )(x_in, w1T, b1c, w2T, b2c, w3T, b3c, w4c, b4s)

    # Strip batch padding, restore the [B, 1] module output shape.
    return out_row[0, :B].reshape(B, 1)


def init_params(key, data_dim, hidden_size):
    half = hidden_size // 2
    ks = jax.random.split(key, 8)

    def linear(kw, kb, fan_in, fan_out):
        # PyTorch nn.Linear default init: U(-1/sqrt(fan_in), 1/sqrt(fan_in))
        bound = 1.0 / jnp.sqrt(fan_in)
        w = jax.random.uniform(kw, (fan_in, fan_out), jnp.float32, -bound, bound)
        b = jax.random.uniform(kb, (1, fan_out), jnp.float32, -bound, bound)
        return w, b

    w1, b1 = linear(ks[0], ks[1], data_dim, hidden_size)
    w2, b2 = linear(ks[2], ks[3], hidden_size, hidden_size)
    w3, b3 = linear(ks[4], ks[5], hidden_size, half)
    w4, b4 = linear(ks[6], ks[7], half, 1)
    return dict(w1=w1, b1=b1, w2=w2, b2=b2, w3=w3, b3=b3, w4=w4, b4=b4)


def reference_forward(x, p):
    alpha = 0.05
    h = _elu(x @ p["w1"] + p["b1"], alpha)
    h = _elu(h @ p["w2"] + p["b2"], alpha)
    h = _elu(h @ p["w3"] + p["b3"], alpha)
    return jax.nn.sigmoid(h @ p["w4"] + p["b4"])


if __name__ == "__main__":
    key = jax.random.PRNGKey(0)
    k_x, k_p = jax.random.split(key)

    batch, data_dim, hidden_size = 64, 16, 32
    x = jax.random.normal(k_x, (batch, data_dim), jnp.float32)
    params = init_params(k_p, data_dim, hidden_size)

    # f32 streaming: bit-close to the pure-JAX reference.
    out = jax.block_until_ready(discriminator_25g(x, params))
    ref = reference_forward(x, params)
    assert out.shape == (batch, 1)
    assert jnp.allclose(out, ref, atol=2e-5, rtol=2e-5), "mismatch vs pure-JAX reference (f32)"

    # bf16 streaming of x (half the dominant HBM stream); f32 accumulation in-kernel,
    # so only ~1e-2-level agreement is expected.
    out_bf16 = jax.block_until_ready(
        discriminator_25g(x, params, stream_dtype=jnp.bfloat16))
    assert jnp.allclose(out_bf16, ref, atol=2e-2, rtol=2e-2), "mismatch vs reference (bf16 stream)"

    print("KERNEL_OK")
</pallas_src>

<mosaic_0001>
module attributes {stable_mosaic.version = 11 : i64} {
  func.func @disc_kernel(%arg0: i32, %arg1: memref<128x16xf32, #tpu.memory_space<vmem>>, %arg2: memref<32x16xf32, #tpu.memory_space<vmem>>, %arg3: memref<32x1xf32, #tpu.memory_space<vmem>>, %arg4: memref<32x32xf32, #tpu.memory_space<vmem>>, %arg5: memref<32x1xf32, #tpu.memory_space<vmem>>, %arg6: memref<16x32xf32, #tpu.memory_space<vmem>>, %arg7: memref<16x1xf32, #tpu.memory_space<vmem>>, %arg8: memref<16x1xf32, #tpu.memory_space<vmem>>, %arg9: memref<1x1xf32, #tpu.memory_space<vmem>>, %arg10: memref<1x128xf32, #tpu.memory_space<vmem>>) attributes {dimension_semantics = [#tpu.dimension_semantics<parallel>], iteration_bounds = array<i64: 1>, scalar_prefetch = 0 : i64, scratch_operands = 0 : i64, tpu.core_type = #tpu.core_type<tc>, window_params = [{transform_indices = @transform_0, window_bounds = array<i64: 128, 16>}, {pipeline_mode = #tpu.pipeline_mode<synchronous>, transform_indices = @transform_1, window_bounds = array<i64: 32, 16>}, {pipeline_mode = #tpu.pipeline_mode<synchronous>, transform_indices = @transform_2, window_bounds = array<i64: 32, 1>}, {pipeline_mode = #tpu.pipeline_mode<synchronous>, transform_indices = @transform_3, window_bounds = array<i64: 32, 32>}, {pipeline_mode = #tpu.pipeline_mode<synchronous>, transform_indices = @transform_4, window_bounds = array<i64: 32, 1>}, {pipeline_mode = #tpu.pipeline_mode<synchronous>, transform_indices = @transform_5, window_bounds = array<i64: 16, 32>}, {pipeline_mode = #tpu.pipeline_mode<synchronous>, transform_indices = @transform_6, window_bounds = array<i64: 16, 1>}, {pipeline_mode = #tpu.pipeline_mode<synchronous>, transform_indices = @transform_7, window_bounds = array<i64: 16, 1>}, {pipeline_mode = #tpu.pipeline_mode<synchronous>, transform_indices = @transform_8, window_bounds = array<i64: 1, 1>}, {transform_indices = @transform_9, window_bounds = array<i64: 1, 128>}]} {
    %c0 = arith.constant 0 : index
    %c0_0 = arith.constant 0 : index
    %0 = vector.load %arg2[%c0, %c0_0] : memref<32x16xf32, #tpu.memory_space<vmem>>, vector<32x16xf32>
    %c0_1 = arith.constant 0 : index
    %c0_2 = arith.constant 0 : index
    %1 = vector.load %arg3[%c0_1, %c0_2] : memref<32x1xf32, #tpu.memory_space<vmem>>, vector<32x1xf32>
    %c0_3 = arith.constant 0 : index
    %c0_4 = arith.constant 0 : index
    %2 = vector.load %arg4[%c0_3, %c0_4] : memref<32x32xf32, #tpu.memory_space<vmem>>, vector<32x32xf32>
    %c0_5 = arith.constant 0 : index
    %c0_6 = arith.constant 0 : index
    %3 = vector.load %arg5[%c0_5, %c0_6] : memref<32x1xf32, #tpu.memory_space<vmem>>, vector<32x1xf32>
    %c0_7 = arith.constant 0 : index
    %c0_8 = arith.constant 0 : index
    %4 = vector.load %arg6[%c0_7, %c0_8] : memref<16x32xf32, #tpu.memory_space<vmem>>, vector<16x32xf32>
    %c0_9 = arith.constant 0 : index
    %c0_10 = arith.constant 0 : index
    %5 = vector.load %arg7[%c0_9, %c0_10] : memref<16x1xf32, #tpu.memory_space<vmem>>, vector<16x1xf32>
    %c0_11 = arith.constant 0 : index
    %c0_12 = arith.constant 0 : index
    %6 = vector.load %arg8[%c0_11, %c0_12] : memref<16x1xf32, #tpu.memory_space<vmem>>, vector<16x1xf32>
    %c0_13 = arith.constant 0 : index
    %c0_14 = arith.constant 0 : index
    %7 = vector.load %arg9[%c0_13, %c0_14] : memref<1x1xf32, #tpu.memory_space<vmem>>, vector<1x1xf32>
    %c0_i32 = arith.constant 0 : i32
    %c128_i32 = arith.constant 128 : i32
    %8 = arith.muli %c0_i32, %c128_i32 : i32
    %9 = tpu.assume_multiple %8, 128 : i32
    %10 = arith.index_cast %9 : i32 to index
    %c0_15 = arith.constant 0 : index
    %11 = vector.load %arg1[%10, %c0_15] : memref<128x16xf32, #tpu.memory_space<vmem>>, vector<128x16xf32>
    %cst = arith.constant dense<0.000000e+00> : vector<32x128xf32>
    %12 = tpu.matmul %0, %11, %cst {dimension_numbers = #tpu.dot_dimension_numbers<[1], [1], [0], [0], [0, 0, 1, 0], [], []>} : vector<32x16xf32>, vector<128x16xf32>, vector<32x128xf32> -> vector<32x128xf32>
    %13 = vector.broadcast %1 : vector<32x1xf32> to vector<32x128xf32>
    %14 = arith.addf %12, %13 : vector<32x128xf32>
    %cst_16 = arith.constant 0.000000e+00 : f32
    %15 = vector.broadcast %cst_16 : f32 to vector<32x128xf32>
    %16 = arith.cmpf ogt, %14, %15 : vector<32x128xf32>
    %17 = math.exp %14 : vector<32x128xf32>
    %cst_17 = arith.constant 1.000000e+00 : f32
    %18 = vector.broadcast %cst_17 : f32 to vector<32x128xf32>
    %19 = arith.subf %17, %18 : vector<32x128xf32>
    %cst_18 = arith.constant 5.000000e-02 : f32
    %20 = vector.broadcast %cst_18 : f32 to vector<32x128xf32>
    %21 = arith.mulf %20, %19 : vector<32x128xf32>
    %22 = arith.select %16, %14, %21 : vector<32x128xi1>, vector<32x128xf32>
    %cst_19 = arith.constant dense<0.000000e+00> : vector<32x128xf32>
    %23 = tpu.matmul %2, %22, %cst_19 {dimension_numbers = #tpu.dot_dimension_numbers<[1], [0], [0], [1], [0, 0, 1, 1], [], []>} : vector<32x32xf32>, vector<32x128xf32>, vector<32x128xf32> -> vector<32x128xf32>
    %24 = vector.broadcast %3 : vector<32x1xf32> to vector<32x128xf32>
    %25 = arith.addf %23, %24 : vector<32x128xf32>
    %cst_20 = arith.constant 0.000000e+00 : f32
    %26 = vector.broadcast %cst_20 : f32 to vector<32x128xf32>
    %27 = arith.cmpf ogt, %25, %26 : vector<32x128xf32>
    %28 = math.exp %25 : vector<32x128xf32>
    %cst_21 = arith.constant 1.000000e+00 : f32
    %29 = vector.broadcast %cst_21 : f32 to vector<32x128xf32>
    %30 = arith.subf %28, %29 : vector<32x128xf32>
    %cst_22 = arith.constant 5.000000e-02 : f32
    %31 = vector.broadcast %cst_22 : f32 to vector<32x128xf32>
    %32 = arith.mulf %31, %30 : vector<32x128xf32>
    %33 = arith.select %27, %25, %32 : vector<32x128xi1>, vector<32x128xf32>
    %cst_23 = arith.constant dense<0.000000e+00> : vector<16x128xf32>
    %34 = tpu.matmul %4, %33, %cst_23 {dimension_numbers = #tpu.dot_dimension_numbers<[1], [0], [0], [1], [0, 0, 1, 1], [], []>} : vector<16x32xf32>, vector<32x128xf32>, vector<16x128xf32> -> vector<16x128xf32>
    %35 = vector.broadcast %5 : vector<16x1xf32> to vector<16x128xf32>
    %36 = arith.addf %34, %35 : vector<16x128xf32>
    %cst_24 = arith.constant 0.000000e+00 : f32
    %37 = vector.broadcast %cst_24 : f32 to vector<16x128xf32>
    %38 = arith.cmpf ogt, %36, %37 : vector<16x128xf32>
    %39 = math.exp %36 : vector<16x128xf32>
    %cst_25 = arith.constant 1.000000e+00 : f32
    %40 = vector.broadcast %cst_25 : f32 to vector<16x128xf32>
    %41 = arith.subf %39, %40 : vector<16x128xf32>
    %cst_26 = arith.constant 5.000000e-02 : f32
    %42 = vector.broadcast %cst_26 : f32 to vector<16x128xf32>
    %43 = arith.mulf %42, %41 : vector<16x128xf32>
    %44 = arith.select %38, %36, %43 : vector<16x128xi1>, vector<16x128xf32>
    %45 = vector.broadcast %6 : vector<16x1xf32> to vector<16x128xf32>
    %46 = arith.mulf %44, %45 : vector<16x128xf32>
    %cst_27 = arith.constant dense<0.000000e+00> : vector<128xf32>
    %47 = vector.multi_reduction <add>, %46, %cst_27 [0] : vector<16x128xf32> to vector<128xf32>
    %48 = vector.shape_cast %47 : vector<128xf32> to vector<1x128xf32>
    %49 = vector.broadcast %7 : vector<1x1xf32> to vector<1x128xf32>
    %50 = arith.addf %48, %49 : vector<1x128xf32>
    %51 = arith.negf %50 : vector<1x128xf32>
    %52 = math.exp %51 : vector<1x128xf32>
    %cst_28 = arith.constant 1.000000e+00 : f32
    %53 = vector.broadcast %cst_28 : f32 to vector<1x128xf32>
    %54 = arith.addf %53, %52 : vector<1x128xf32>
    %55 = arith.divf %53, %54 : vector<1x128xf32>
    %c0_29 = arith.constant 0 : index
    %56 = arith.index_cast %9 : i32 to index
    %57 = vector.load %arg10[%c0_29, %56] : memref<1x128xf32, #tpu.memory_space<vmem>>, vector<1x128xf32>
    tpu.vector_store %arg10[%c0_29, %56], %55 {strides = array<i32>} : memref<1x128xf32, #tpu.memory_space<vmem>>, vector<1x128xf32>,
    %c1_i32 = arith.constant 1 : i32
    return
  }
  func.func @transform_0(%arg0: i32) -> (i32, i32) {
    %c0_i32 = arith.constant 0 : i32
    %c0_i32_0 = arith.constant 0 : i32
    return %arg0, %c0_i32 : i32, i32
  }
  func.func @transform_1(%arg0: i32) -> (i32, i32) {
    %c0_i32 = arith.constant 0 : i32
    %c0_i32_0 = arith.constant 0 : i32
    %c0_i32_1 = arith.constant 0 : i32
    return %c0_i32, %c0_i32_0 : i32, i32
  }
  func.func @transform_2(%arg0: i32) -> (i32, i32) {
    %c0_i32 = arith.constant 0 : i32
    %c0_i32_0 = arith.constant 0 : i32
    %c0_i32_1 = arith.constant 0 : i32
    return %c0_i32, %c0_i32_0 : i32, i32
  }
  func.func @transform_3(%arg0: i32) -> (i32, i32) {
    %c0_i32 = arith.constant 0 : i32
    %c0_i32_0 = arith.constant 0 : i32
    %c0_i32_1 = arith.constant 0 : i32
    return %c0_i32, %c0_i32_0 : i32, i32
  }
  func.func @transform_4(%arg0: i32) -> (i32, i32) {
    %c0_i32 = arith.constant 0 : i32
    %c0_i32_0 = arith.constant 0 : i32
    %c0_i32_1 = arith.constant 0 : i32
    return %c0_i32, %c0_i32_0 : i32, i32
  }
  func.func @transform_5(%arg0: i32) -> (i32, i32) {
    %c0_i32 = arith.constant 0 : i32
    %c0_i32_0 = arith.constant 0 : i32
    %c0_i32_1 = arith.constant 0 : i32
    return %c0_i32, %c0_i32_0 : i32, i32
  }
  func.func @transform_6(%arg0: i32) -> (i32, i32) {
    %c0_i32 = arith.constant 0 : i32
    %c0_i32_0 = arith.constant 0 : i32
    %c0_i32_1 = arith.constant 0 : i32
    return %c0_i32, %c0_i32_0 : i32, i32
  }
  func.func @transform_7(%arg0: i32) -> (i32, i32) {
    %c0_i32 = arith.constant 0 : i32
    %c0_i32_0 = arith.constant 0 : i32
    %c0_i32_1 = arith.constant 0 : i32
    return %c0_i32, %c0_i32_0 : i32, i32
  }
  func.func @transform_8(%arg0: i32) -> (i32, i32) {
    %c0_i32 = arith.constant 0 : i32
    %c0_i32_0 = arith.constant 0 : i32
    %c0_i32_1 = arith.constant 0 : i32
    return %c0_i32, %c0_i32_0 : i32, i32
  }
  func.func @transform_9(%arg0: i32) -> (i32, i32) {
    %c0_i32 = arith.constant 0 : i32
    %c0_i32_0 = arith.constant 0 : i32
    return %c0_i32, %arg0 : i32, i32
  }
}

</mosaic_0001>

<llo_original>
// kernel: tpu_custom_call.1
$region0: #{tpu_custom_call.1}
  #allocation0 [shape = 'u32[]', space=smem, size = 0x4, offset = 0x4, fixed_abs, tag = 'smem constant byte address 0x4 - core index']
  #allocation1 [shape = 'u32[144,128]{1,0:T(1,128)}', space=vmem, size = 0x12000, scoped, tag = 'internal scratch']
  #allocation2 [shape = 'f32[1,1]{1,0:T(1,128)S(1)}', space=vmem, size = 0x200, scoped, tag = 'scoped memory for tpu_custom_call.1']
  %s0 = inlined_call_operand.vmem [shape: f32[64,16], index: 0, kind: input, shape index: {}]
  %s1 = inlined_call_operand.vmem [shape: f32[32,16], index: 1, kind: input, shape index: {}]
  %s2 = inlined_call_operand.vmem [shape: f32[32,1], index: 2, kind: input, shape index: {}]
  %s3 = inlined_call_operand.vmem [shape: f32[32,32], index: 3, kind: input, shape index: {}]
  %s4 = inlined_call_operand.vmem [shape: f32[32,1], index: 4, kind: input, shape index: {}]
  %s5 = inlined_call_operand.vmem [shape: f32[16,32], index: 5, kind: input, shape index: {}]
  %s6 = inlined_call_operand.vmem [shape: f32[16,1], index: 6, kind: input, shape index: {}]
  %s7 = inlined_call_operand.vmem [shape: f32[16,1], index: 7, kind: input, shape index: {}]
  %s8 = inlined_call_operand.<no memory space> [shape: f32[1,1], index: 8, kind: input, shape index: {}]
  %s9 = inlined_call_operand.hbm [shape: f32[1,128], index: 9, kind: output, shape index: {}]
  %s10 = sld [smem:[#allocation0]]
  $region46: #{tpu_custom_call.1} parent=0
    _
  %s12 = ssub.s32 1, %s10
  %s13 = scalar_select 0, %s12, %s10
  %v14 = vstv %s8
  %15 = vst [vmem:[#allocation2] sm:$0x1] %v14
  $region1: #{tpu_custom_call.1} parent=0
    #allocation3 [shape = 'u8[512]{0}', space=vmem, size = 0x400, scoped, tag = 'output window, operand 0, single buffered']
    #allocation4 [shape = 's32[1]{0}', space=sflag, size = 0x4, scoped, tag = 'scoped memory for tpu_custom_call.1']
    %16 = vsyncpa [#allocation4], 0
    // Predicated region
    $region2: #{tpu_custom_call.1} parent=1 // pred_check
      _
    $region3: #{tpu_custom_call.1} parent=1 // pred_check_branch
      %18 = sbr.rel (0) target = $region5
    $region4: #{tpu_custom_call.1} parent=1 // pred_region
      _
    $region5: #{tpu_custom_call.1} parent=1 // pred_fallthru
      _
    // Predicated region
    $region6: #{tpu_custom_call.1} parent=1 // pred_check
      _
    $region7: #{tpu_custom_call.1} parent=1 // pred_check_branch
      %20 = sbr.rel (0) target = $region9
    $region8: #{tpu_custom_call.1} parent=1 // pred_region
      _
    $region9: #{tpu_custom_call.1} parent=1 // pred_fallthru
      _
    // Predicated region
    $region10: #{tpu_custom_call.1} parent=1 // pred_check
      _
    $region11: #{tpu_custom_call.1} parent=1 // pred_check_branch
      %22 = sbr.rel (0) target = $region13
    $region12: #{tpu_custom_call.1} parent=1 // pred_region
      _
    $region13: #{tpu_custom_call.1} parent=1 // pred_fallthru
      _
    // Predicated region
    $region14: #{tpu_custom_call.1} parent=1 // pred_check
      _
    $region15: #{tpu_custom_call.1} parent=1 // pred_check_branch
      %24 = sbr.rel (0) target = $region17
    $region16: #{tpu_custom_call.1} parent=1 // pred_region
      _
    $region17: #{tpu_custom_call.1} parent=1 // pred_fallthru
      _
    // Predicated region
    $region18: #{tpu_custom_call.1} parent=1 // pred_check
      _
    $region19: #{tpu_custom_call.1} parent=1 // pred_check_branch
      %26 = sbr.rel (0) target = $region21
    $region20: #{tpu_custom_call.1} parent=1 // pred_region
      _
    $region21: #{tpu_custom_call.1} parent=1 // pred_fallthru
      _
    // Predicated region
    $region22: #{tpu_custom_call.1} parent=1 // pred_check
      _
    $region23: #{tpu_custom_call.1} parent=1 // pred_check_branch
      %28 = sbr.rel (0) target = $region25
    $region24: #{tpu_custom_call.1} parent=1 // pred_region
      _
    $region25: #{tpu_custom_call.1} parent=1 // pred_fallthru
      _
    // Predicated region
    $region26: #{tpu_custom_call.1} parent=1 // pred_check
      _
    $region27: #{tpu_custom_call.1} parent=1 // pred_check_branch
      %30 = sbr.rel (0) target = $region29
    $region28: #{tpu_custom_call.1} parent=1 // pred_region
      _
    $region29: #{tpu_custom_call.1} parent=1 // pred_fallthru
      _
    // Predicated region
    $region30: #{tpu_custom_call.1} parent=1 // pred_check
      _
    $region31: #{tpu_custom_call.1} parent=1 // pred_check_branch
      %32 = sbr.rel (0) target = $region33
    $region32: #{tpu_custom_call.1} parent=1 // pred_region
      _
    $region33: #{tpu_custom_call.1} parent=1 // pred_fallthru
      _
    // Predicated region
    $region34: #{tpu_custom_call.1} parent=1 // pred_check
      _
    $region35: #{tpu_custom_call.1} parent=1 // pred_check_branch
      %34 = sbr.rel (0) target = $region37
    $region36: #{tpu_custom_call.1} parent=1 // pred_region
      _
    $region37: #{tpu_custom_call.1} parent=1 // pred_fallthru
      _
    %v35 = vld [vmem:[%s1] sm:$0xff]
    %v36 = vld [vmem:[%s1 + $0x8] sm:$0xff]
    %v37 = vld [vmem:[%s1 + $0x10] sm:$0xff]
    %v38 = vld [vmem:[%s1 + $0x18] sm:$0xff]
    %v39 = vld [vmem:[%s2] sm:$0xff]
    %v40 = vld [vmem:[%s2 + $0x8] sm:$0xff]
    %v41 = vld [vmem:[%s2 + $0x10] sm:$0xff]
    %v42 = vld [vmem:[%s2 + $0x18] sm:$0xff]
    %v43 = vld [vmem:[%s3] sm:$0xff]
    %v44 = vld [vmem:[%s3 + $0x8] sm:$0xff]
    %v45 = vld [vmem:[%s3 + $0x10] sm:$0xff]
    %v46 = vld [vmem:[%s3 + $0x18] sm:$0xff]
    %v47 = vld [vmem:[%s4] sm:$0xff]
    %v48 = vld [vmem:[%s4 + $0x8] sm:$0xff]
    %v49 = vld [vmem:[%s4 + $0x10] sm:$0xff]
    %v50 = vld [vmem:[%s4 + $0x18] sm:$0xff]
    %v51 = vld [vmem:[%s5] sm:$0xff]
    %v52 = vld [vmem:[%s5 + $0x8] sm:$0xff]
    %v53 = vld [vmem:[%s6] sm:$0xff]
    %v54 = vld [vmem:[%s6 + $0x8] sm:$0xff]
    %v55 = vld [vmem:[%s7] sm:$0xff]
    %v56 = vld [vmem:[%s7 + $0x8] sm:$0xff]
    %v57 = vld [vmem:[#allocation2] sm:$0x1]
    %v58 = vld [vmem:[%s0] sm:$0xff]
    %v59 = vld [vmem:[%s0 + $0x8] sm:$0xff]
    %v60 = vld [vmem:[%s0 + $0x10] sm:$0xff]
    %v61 = vld [vmem:[%s0 + $0x18] sm:$0xff]
    %v62 = vld [vmem:[%s0 + $0x20] sm:$0xff]
    %v63 = vld [vmem:[%s0 + $0x28] sm:$0xff]
    %v64 = vld [vmem:[%s0 + $0x30] sm:$0xff]
    %v65 = vld [vmem:[%s0 + $0x38] sm:$0xff]
    %v66 = vld [vmem:[%s0 + $0x40] sm:$0xff]
    %v67 = vld [vmem:[%s0 + $0x48] sm:$0xff]
    %v68 = vld [vmem:[%s0 + $0x50] sm:$0xff]
    %v69 = vld [vmem:[%s0 + $0x58] sm:$0xff]
    %v70 = vld [vmem:[%s0 + $0x60] sm:$0xff]
    %v71 = vld [vmem:[%s0 + $0x68] sm:$0xff]
    %v72 = vld [vmem:[%s0 + $0x70] sm:$0xff]
    %v73 = vld [vmem:[%s0 + $0x78] sm:$0xff]
    %75 = vset.pattern.permute.xlu0 0
    %76 = vperm.xlu0 %75, %v39
    %v77 = vpop.permute.xlu0 %76
    %80 = vset.pattern.permute.xlu0 0
    %81 = vperm.xlu0 %80, %v40
    %v82 = vpop.permute.xlu0 %81
    %85 = vset.pattern.permute.xlu0 0
    %86 = vperm.xlu0 %85, %v41
    %v87 = vpop.permute.xlu0 %86
    %90 = vset.pattern.permute.xlu0 0
    %91 = vperm.xlu0 %90, %v42
    %v92 = vpop.permute.xlu0 %91
    %vm94 = vcmask 130048
    %v96 = vsel %vm94, %v35, 0
    %v99 = vsel %vm94, %v36, 0
    %v102 = vsel %vm94, %v37, 0
    %v105 = vsel %vm94, %v38, 0
    %v108 = vsel %vm94, %v58, 0
    %v111 = vsel %vm94, %v59, 0
    %v114 = vsel %vm94, %v60, 0
    %v117 = vsel %vm94, %v61, 0
    %v120 = vsel %vm94, %v62, 0
    %v123 = vsel %vm94, %v63, 0
    %v126 = vsel %vm94, %v64, 0
    %v129 = vsel %vm94, %v65, 0
    %v132 = vsel %vm94, %v66, 0
    %v135 = vsel %vm94, %v67, 0
    %v138 = vsel %vm94, %v68, 0
    %v141 = vsel %vm94, %v69, 0
    %v144 = vsel %vm94, %v70, 0
    %v147 = vsel %vm94, %v71, 0
    %v150 = vsel %vm94, %v72, 0
    %v153 = vsel %vm94, %v73, 0
    %155 = vmatprep.subr.mxu0 0.0
    %156 = vmatpush1.xpose.msra.mxu0 %v153
    %157 = vmatprep.subr.mxu0 0.0
    %158 = vmatpush1.xpose.msra.mxu0 %v150
    %159 = vmatprep.subr.mxu0 0.0
    %160 = vmatpush1.xpose.msra.mxu0 %v147
    %161 = vmatprep.subr.mxu0 0.0
    %162 = vmatpush1.xpose.msra.mxu0 %v144
    %163 = vmatprep.subr.mxu0 0.0
    %164 = vmatpush1.xpose.msra.mxu0 %v141
    %165 = vmatprep.subr.mxu0 0.0
    %166 = vmatpush1.xpose.msra.mxu0 %v138
    %167 = vmatprep.subr.mxu0 0.0
    %168 = vmatpush1.xpose.msra.mxu0 %v135
    %169 = vmatprep.subr.mxu0 0.0
    %170 = vmatpush1.xpose.msra.mxu0 %v132
    %171 = vmatprep.subr.mxu0 0.0
    %172 = vmatpush1.xpose.msra.mxu0 %v129
    %173 = vmatprep.subr.mxu0 0.0
    %174 = vmatpush1.xpose.msra.mxu0 %v126
    %175 = vmatprep.subr.mxu0 0.0
    %176 = vmatpush1.xpose.msra.mxu0 %v123
    %177 = vmatprep.subr.mxu0 0.0
    %178 = vmatpush1.xpose.msra.mxu0 %v120
    %179 = vmatprep.subr.mxu0 0.0
    %180 = vmatpush1.xpose.msra.mxu0 %v117
    %181 = vmatprep.subr.mxu0 0.0
    %182 = vmatpush1.xpose.msra.mxu0 %v114
    %183 = vmatprep.subr.mxu0 0.0
    %184 = vmatpush1.xpose.msra.mxu0 %v111
    %185 = vmatprep.subr.mxu0 0.0
    %186 = vmatpush1.xpose.msra.mxu0 %v108
    %187 = vmatprep.subr.mxu0 0.0
    %188 = vmatpush2.xpose.msra.mxu0 0.0
    %189 = vmatprep.subr.mxu0 0.0
    %190 = vmatpush2.xpose.msra.mxu0 0.0
    %191 = vmatprep.subr.mxu0 0.0
    %192 = vmatpush2.xpose.msra.mxu0 0.0
    %193 = vmatprep.subr.mxu0 0.0
    %194 = vmatpush2.xpose.msra.mxu0 0.0
    %195 = vmatprep.subr.mxu0 0.0
    %196 = vmatpush2.xpose.msra.mxu0 0.0
    %197 = vmatprep.subr.mxu0 0.0
    %198 = vmatpush2.xpose.msra.mxu0 0.0
    %199 = vmatprep.subr.mxu0 0.0
    %200 = vmatpush2.xpose.msra.mxu0 0.0
    %201 = vmatprep.subr.mxu0 0.0
    %202 = vmatpush2.xpose.msra.mxu0 0.0
    %203 = vmatprep.subr.mxu0 0.0
    %204 = vmatpush2.xpose.msra.mxu0 0.0
    %205 = vmatprep.subr.mxu0 0.0
    %206 = vmatpush2.xpose.msra.mxu0 0.0
    %207 = vmatprep.subr.mxu0 0.0
    %208 = vmatpush2.xpose.msra.mxu0 0.0
    %209 = vmatprep.subr.mxu0 0.0
    %210 = vmatpush2.xpose.msra.mxu0 0.0
    %211 = vmatprep.subr.mxu0 0.0
    %212 = vmatpush2.xpose.msra.mxu0 0.0
    %213 = vmatprep.subr.mxu0 0.0
    %214 = vmatpush2.xpose.msra.mxu0 0.0
    %215 = vmatprep.subr.mxu0 0.0
    %216 = vmatpush2.xpose.msra.mxu0 0.0
    %217 = vmatprep.subr.mxu0 0.0
    %218 = vmatpush2.xpose.msra.mxu0 0.0
    %219 = vmatprep.mubr.f32.mxu0 0.0
    %220 = vmatmul.mubr.f32.gmra.mxu0 %v96
    %v221 = vpop.f32.mrf.mxu0
    %v222 = vadd.f32 %v77, %v221
    %v223 = vpop.f32.mrf.mxu0
    %224 = vmatprep.mubr.f32.mxu0 0.0
    %225 = vmatmul.mubr.f32.gmra.mxu0 %v99
    %v226 = vpop.f32.mrf.mxu0
    %v227 = vadd.f32 %v82, %v226
    %v228 = vpop.f32.mrf.mxu0
    %229 = vmatprep.mubr.f32.mxu0 0.0
    %230 = vmatmul.mubr.f32.gmra.mxu0 %v102
    %v231 = vpop.f32.mrf.mxu0
    %v232 = vadd.f32 %v87, %v231
    %v233 = vpop.f32.mrf.mxu0
    %234 = vmatprep.mubr.f32.mxu0 0.0
    %235 = vmatmul.mubr.f32.gmra.mxu0 %v105
    %v236 = vpop.f32.mrf.mxu0
    %v237 = vadd.f32 %v92, %v236
    %v238 = vpop.f32.mrf.mxu0
    %239 = vdwg.mxu0
    %vm240 = vcmp.gt.f32.partialorder %v222, 0.0
    %vm241 = vcmp.gt.f32.partialorder %v227, 0.0
    %vm242 = vcmp.gt.f32.partialorder %v232, 0.0
    %vm243 = vcmp.gt.f32.partialorder %v237, 0.0
    %v244 = vmul.f32 %v222, 1.442695
    %v245 = vpow.pop %v244
    %v246 = vmul.f32 %v227, 1.442695
    %v247 = vpow.pop %v246
    %v248 = vmul.f32 %v232, 1.442695
    %v249 = vpow.pop %v248
    %v250 = vmul.f32 %v237, 1.442695
    %v251 = vpow.pop %v250
    %v252 = vsub.f32 %v245, 1.0
    %v253 = vsub.f32 %v247, 1.0
    %v254 = vsub.f32 %v249, 1.0
    %v255 = vsub.f32 %v251, 1.0
    %v256 = vmul.f32 %v252, 0.05
    %v257 = vmul.f32 %v253, 0.05
    %v258 = vmul.f32 %v254, 0.05
    %v259 = vmul.f32 %v255, 0.05
    %v260 = vsel %vm240, %v222, %v256
    %v261 = vsel %vm241, %v227, %v257
    %v262 = vsel %vm242, %v232, %v258
    %v263 = vsel %vm243, %v237, %v259
    %265 = vset.pattern.permute.xlu0 0
    %266 = vperm.xlu0 %265, %v47
    %v267 = vpop.permute.xlu0 %266
    %270 = vset.pattern.permute.xlu0 0
    %271 = vperm.xlu0 %270, %v48
    %v272 = vpop.permute.xlu0 %271
    %275 = vset.pattern.permute.xlu0 0
    %276 = vperm.xlu0 %275, %v49
    %v277 = vpop.permute.xlu0 %276
    %280 = vset.pattern.permute.xlu0 0
    %281 = vperm.xlu0 %280, %v50
    %v282 = vpop.permute.xlu0 %281
    %vm284 = vcmask 261120
    %v286 = vsel %vm284, %v43, 0
    %v289 = vsel %vm284, %v44, 0
    %v292 = vsel %vm284, %v45, 0
    %v295 = vsel %vm284, %v46, 0
    %297 = vmatprep.subr.mxu0 0.0
    %298 = vmatpush1.msra.mxu0 0.0
    %299 = vmatprep.subr.mxu0 0.0
    %300 = vmatpush1.msra.mxu0 0.0
    %301 = vmatprep.subr.mxu0 0.0
    %302 = vmatpush1.msra.mxu0 0.0
    %303 = vmatprep.subr.mxu0 0.0
    %304 = vmatpush1.msra.mxu0 0.0
    %305 = vmatprep.subr.mxu0 0.0
    %306 = vmatpush1.msra.mxu0 0.0
    %307 = vmatprep.subr.mxu0 0.0
    %308 = vmatpush1.msra.mxu0 0.0
    %309 = vmatprep.subr.mxu0 0.0
    %310 = vmatpush1.msra.mxu0 0.0
    %311 = vmatprep.subr.mxu0 0.0
    %312 = vmatpush1.msra.mxu0 0.0
    %313 = vmatprep.subr.mxu0 0.0
    %314 = vmatpush1.msra.mxu0 0.0
    %315 = vmatprep.subr.mxu0 0.0
    %316 = vmatpush1.msra.mxu0 0.0
    %317 = vmatprep.subr.mxu0 0.0
    %318 = vmatpush1.msra.mxu0 0.0
    %319 = vmatprep.subr.mxu0 0.0
    %320 = vmatpush1.msra.mxu0 0.0
    %321 = vmatprep.subr.mxu0 0.0
    %322 = vmatpush1.msra.mxu0 %v263
    %323 = vmatprep.subr.mxu0 0.0
    %324 = vmatpush1.msra.mxu0 %v262
    %325 = vmatprep.subr.mxu0 0.0
    %326 = vmatpush1.msra.mxu0 %v261
    %327 = vmatprep.subr.mxu0 0.0
    %328 = vmatpush1.msra.mxu0 %v260
    %329 = vmatprep.subr.mxu0 0.0
    %330 = vmatpush2.msra.mxu0 0.0
    %331 = vmatprep.subr.mxu0 0.0
    %332 = vmatpush2.msra.mxu0 0.0
    %333 = vmatprep.subr.mxu0 0.0
    %334 = vmatpush2.msra.mxu0 0.0
    %335 = vmatprep.subr.mxu0 0.0
    %336 = vmatpush2.msra.mxu0 0.0
    %337 = vmatprep.subr.mxu0 0.0
    %338 = vmatpush2.msra.mxu0 0.0
    %339 = vmatprep.subr.mxu0 0.0
    %340 = vmatpush2.msra.mxu0 0.0
    %341 = vmatprep.subr.mxu0 0.0
    %342 = vmatpush2.msra.mxu0 0.0
    %343 = vmatprep.subr.mxu0 0.0
    %344 = vmatpush2.msra.mxu0 0.0
    %345 = vmatprep.subr.mxu0 0.0
    %346 = vmatpush2.msra.mxu0 0.0
    %347 = vmatprep.subr.mxu0 0.0
    %348 = vmatpush2.msra.mxu0 0.0
    %349 = vmatprep.subr.mxu0 0.0
    %350 = vmatpush2.msra.mxu0 0.0
    %351 = vmatprep.subr.mxu0 0.0
    %352 = vmatpush2.msra.mxu0 0.0
    %353 = vmatprep.subr.mxu0 0.0
    %354 = vmatpush2.msra.mxu0 0.0
    %355 = vmatprep.subr.mxu0 0.0
    %356 = vmatpush2.msra.mxu0 0.0
    %357 = vmatprep.subr.mxu0 0.0
    %358 = vmatpush2.msra.mxu0 0.0
    %359 = vmatprep.subr.mxu0 0.0
    %360 = vmatpush2.msra.mxu0 0.0
    %361 = vmatprep.mubr.f32.mxu0 0.0
    %362 = vmatmul.mubr.f32.gmra.mxu0 %v286
    %v363 = vpop.f32.mrf.mxu0
    %v364 = vadd.f32 %v267, %v363
    %v365 = vpop.f32.mrf.mxu0
    %366 = vmatprep.mubr.f32.mxu0 0.0
    %367 = vmatmul.mubr.f32.gmra.mxu0 %v289
    %v368 = vpop.f32.mrf.mxu0
    %v369 = vadd.f32 %v272, %v368
    %v370 = vpop.f32.mrf.mxu0
    %371 = vmatprep.mubr.f32.mxu0 0.0
    %372 = vmatmul.mubr.f32.gmra.mxu0 %v292
    %v373 = vpop.f32.mrf.mxu0
    %v374 = vadd.f32 %v277, %v373
    %v375 = vpop.f32.mrf.mxu0
    %376 = vmatprep.mubr.f32.mxu0 0.0
    %377 = vmatmul.mubr.f32.gmra.mxu0 %v295
    %v378 = vpop.f32.mrf.mxu0
    %v379 = vadd.f32 %v282, %v378
    %v380 = vpop.f32.mrf.mxu0
    %381 = vdwg.mxu0
    %vm382 = vcmp.gt.f32.partialorder %v364, 0.0
    %vm383 = vcmp.gt.f32.partialorder %v369, 0.0
    %vm384 = vcmp.gt.f32.partialorder %v374, 0.0
    %vm385 = vcmp.gt.f32.partialorder %v379, 0.0
    %v386 = vmul.f32 %v364, 1.442695
    %v387 = vpow.pop %v386
    %v388 = vmul.f32 %v369, 1.442695
    %v389 = vpow.pop %v388
    %v390 = vmul.f32 %v374, 1.442695
    %v391 = vpow.pop %v390
    %v392 = vmul.f32 %v379, 1.442695
    %v393 = vpow.pop %v392
    %v394 = vsub.f32 %v387, 1.0
    %v395 = vsub.f32 %v389, 1.0
    %v396 = vsub.f32 %v391, 1.0
    %v397 = vsub.f32 %v393, 1.0
    %v398 = vmul.f32 %v394, 0.05
    %v399 = vmul.f32 %v395, 0.05
    %v400 = vmul.f32 %v396, 0.05
    %v401 = vmul.f32 %v397, 0.05
    %v402 = vsel %vm382, %v364, %v398
    %v403 = vsel %vm383, %v369, %v399
    %v404 = vsel %vm384, %v374, %v400
    %v405 = vsel %vm385, %v379, %v401
    %407 = vset.pattern.permute.xlu0 0
    %408 = vperm.xlu0 %407, %v53
    %v409 = vpop.permute.xlu0 %408
    %412 = vset.pattern.permute.xlu0 0
    %413 = vperm.xlu0 %412, %v54
    %v414 = vpop.permute.xlu0 %413
    %v417 = vsel %vm284, %v51, 0
    %v420 = vsel %vm284, %v52, 0
    %422 = vmatprep.subr.mxu0 0.0
    %423 = vmatpush1.msra.mxu0 0.0
    %424 = vmatprep.subr.mxu0 0.0
    %425 = vmatpush1.msra.mxu0 0.0
    %426 = vmatprep.subr.mxu0 0.0
    %427 = vmatpush1.msra.mxu0 0.0
    %428 = vmatprep.subr.mxu0 0.0
    %429 = vmatpush1.msra.mxu0 0.0
    %430 = vmatprep.subr.mxu0 0.0
    %431 = vmatpush1.msra.mxu0 0.0
    %432 = vmatprep.subr.mxu0 0.0
    %433 = vmatpush1.msra.mxu0 0.0
    %434 = vmatprep.subr.mxu0 0.0
    %435 = vmatpush1.msra.mxu0 0.0
    %436 = vmatprep.subr.mxu0 0.0
    %437 = vmatpush1.msra.mxu0 0.0
    %438 = vmatprep.subr.mxu0 0.0
    %439 = vmatpush1.msra.mxu0 0.0
    %440 = vmatprep.subr.mxu0 0.0
    %441 = vmatpush1.msra.mxu0 0.0
    %442 = vmatprep.subr.mxu0 0.0
    %443 = vmatpush1.msra.mxu0 0.0
    %444 = vmatprep.subr.mxu0 0.0
    %445 = vmatpush1.msra.mxu0 0.0
    %446 = vmatprep.subr.mxu0 0.0
    %447 = vmatpush1.msra.mxu0 %v405
    %448 = vmatprep.subr.mxu0 0.0
    %449 = vmatpush1.msra.mxu0 %v404
    %450 = vmatprep.subr.mxu0 0.0
    %451 = vmatpush1.msra.mxu0 %v403
    %452 = vmatprep.subr.mxu0 0.0
    %453 = vmatpush1.msra.mxu0 %v402
    %454 = vmatprep.subr.mxu0 0.0
    %455 = vmatpush2.msra.mxu0 0.0
    %456 = vmatprep.subr.mxu0 0.0
    %457 = vmatpush2.msra.mxu0 0.0
    %458 = vmatprep.subr.mxu0 0.0
    %459 = vmatpush2.msra.mxu0 0.0
    %460 = vmatprep.subr.mxu0 0.0
    %461 = vmatpush2.msra.mxu0 0.0
    %462 = vmatprep.subr.mxu0 0.0
    %463 = vmatpush2.msra.mxu0 0.0
    %464 = vmatprep.subr.mxu0 0.0
    %465 = vmatpush2.msra.mxu0 0.0
    %466 = vmatprep.subr.mxu0 0.0
    %467 = vmatpush2.msra.mxu0 0.0
    %468 = vmatprep.subr.mxu0 0.0
    %469 = vmatpush2.msra.mxu0 0.0
    %470 = vmatprep.subr.mxu0 0.0
    %471 = vmatpush2.msra.mxu0 0.0
    %472 = vmatprep.subr.mxu0 0.0
    %473 = vmatpush2.msra.mxu0 0.0
    %474 = vmatprep.subr.mxu0 0.0
    %475 = vmatpush2.msra.mxu0 0.0
    %476 = vmatprep.subr.mxu0 0.0
    %477 = vmatpush2.msra.mxu0 0.0
    %478 = vmatprep.subr.mxu0 0.0
    %479 = vmatpush2.msra.mxu0 0.0
    %480 = vmatprep.subr.mxu0 0.0
    %481 = vmatpush2.msra.mxu0 0.0
    %482 = vmatprep.subr.mxu0 0.0
    %483 = vmatpush2.msra.mxu0 0.0
    %484 = vmatprep.subr.mxu0 0.0
    %485 = vmatpush2.msra.mxu0 0.0
    %486 = vmatprep.mubr.f32.mxu0 0.0
    %487 = vmatmul.mubr.f32.gmra.mxu0 %v417
    %v488 = vpop.f32.mrf.mxu0
    %v489 = vadd.f32 %v409, %v488
    %v490 = vpop.f32.mrf.mxu0
    %491 = vmatprep.mubr.f32.mxu0 0.0
    %492 = vmatmul.mubr.f32.gmra.mxu0 %v420
    %v493 = vpop.f32.mrf.mxu0
    %v494 = vadd.f32 %v414, %v493
    %v495 = vpop.f32.mrf.mxu0
    %496 = vdwg.mxu0
    %vm497 = vcmp.gt.f32.partialorder %v489, 0.0
    %vm498 = vcmp.gt.f32.partialorder %v494, 0.0
    %v499 = vmul.f32 %v489, 1.442695
    %v500 = vpow.pop %v499
    %v501 = vmul.f32 %v494, 1.442695
    %v502 = vpow.pop %v501
    %v503 = vsub.f32 %v500, 1.0
    %v504 = vsub.f32 %v502, 1.0
    %v505 = vmul.f32 %v503, 0.05
    %v506 = vmul.f32 %v504, 0.05
    %v507 = vsel %vm497, %v489, %v505
    %v508 = vsel %vm498, %v494, %v506
    %510 = vset.pattern.permute.xlu0 0
    %511 = vperm.xlu0 %510, %v55
    %v512 = vpop.permute.xlu0 %511
    %515 = vset.pattern.permute.xlu0 0
    %516 = vperm.xlu0 %515, %v56
    %v517 = vpop.permute.xlu0 %516
    %v519 = vmul.f32 %v507, %v512
    %v520 = vmul.f32 %v508, %v517
    %v521 = vadd.f32 %v519, %v520
    %v522 = vrot.slane %v521, 4
    %v523 = vadd.f32 %v521, %v522
    %v524 = vrot.slane %v523, 2
    %v525 = vadd.f32 %v523, %v524
    %v526 = vrot.slane %v525, 1
    %v527 = vadd.f32 %v525, %v526
    %529 = vset.pattern.permute.xlu0 0
    %530 = vperm.xlu0 %529, %v57
    %v531 = vpop.permute.xlu0 %530
    %v533 = vlaneseq
    %v534 = vshrl.u32 %v533, 7
    %v535 = vsub.s32 0, %v534
    %v536 = vrot.slane %v531, %v535
    %v537 = vadd.f32 %v527, %v536
    %v538 = vxor.u32 %v537, 2147483648
    %v539 = vmul.f32 %v538, 1.442695
    %v540 = vpow.pop %v539
    %v541 = vadd.f32 %v540, 1.0
    %v542 = vrcp.pop %v541
    %v543 = vmul.f32 1.0, %v542
    %544 = vst [vmem:[#allocation3] sm:$0x1] %v543
    // Predicated region
    $region38: #{tpu_custom_call.1} parent=1 // pred_check
      _
    $region39: #{tpu_custom_call.1} parent=1 // pred_check_branch
      %546 = sbr.rel (0) target = $region41
    $region40: #{tpu_custom_call.1} parent=1 // pred_region
      %s548 = ssub.s32 16, 16
      %549 = vsyncadd [#allocation4], %s548
      %s551 = sshll.u32 [#allocation3], 4
      %s552 = int_to_ptr.vmem [resolvable:$true] %s551
      %554 = dma.vmem_to_hbm [thread:$0]  %s552, 16, %s9, [#allocation4]
    $region41: #{tpu_custom_call.1} parent=1 // pred_fallthru
      _
    // Predicated region
    $region42: #{tpu_custom_call.1} parent=1 // pred_check
      _
    $region43: #{tpu_custom_call.1} parent=1 // pred_check_branch
      %556 = sbr.rel (0) target = $region45
    $region44: #{tpu_custom_call.1} parent=1 // pred_region
      %557 = dma.done [#allocation4], 16
    $region45: #{tpu_custom_call.1} parent=1 // pred_fallthru
      _
    %558 = vsyncpa [#allocation4], 1

</llo_original>
